<compile_context>
chip_gen: v7x
topology: tpu7x:2x2x1
jax: 0.10.0
libtpu: 0.0.40
codegen_flags: <defaults>
</compile_context>

<pallas_src>
import jax
import jax.numpy as jnp
from jax.experimental import pallas as pl
from jax.experimental.pallas import tpu as pltpu


def _round_up(x, m):
    return ((x + m - 1) // m) * m


def _select_batch_tiling(batch, batch_tile):
    """Balanced, 16-aligned batch tiles; grid >= 2 for mid/large batches (v7x megacore)."""
    n_tiles = pl.cdiv(batch, batch_tile)
    if batch >= 32:
        n_tiles = max(n_tiles, 2)
    tb = _round_up(pl.cdiv(batch, n_tiles), 16)
    n_tiles = pl.cdiv(batch, tb)
    return tb, n_tiles


def q_critic_kernel(s_ref, a_ref, w1s_ref, w1a_ref, b1_ref, w2_ref, b2_ref, o_ref):
    # s:[TB,Ds] a:[TB,Da]  w1s:[Ds,H] w1a:[Da,H]  b1:[1,H]  w2:[H,H]  b2:[1,H]  o:[TB,H]
    # fc1 with the concat fused in (split-K over state/action), f32 accumulation.
    h = (
        jnp.dot(s_ref[...], w1s_ref[...], preferred_element_type=jnp.float32)
        + jnp.dot(a_ref[...], w1a_ref[...], preferred_element_type=jnp.float32)
        + b1_ref[...]
    )
    h = jnp.tanh(h)  # f32 elementwise epilogue (rides the EUP slot)
    # fc2: bf16 MXU operands, f32 accumulate, f32 bias.
    out = (
        jnp.dot(h.astype(w2_ref.dtype), w2_ref[...], preferred_element_type=jnp.float32)
        + b2_ref[...]
    )
    o_ref[...] = out.astype(o_ref.dtype)


def q_critic_forward(state, action, params, *, batch_tile=512, out_dtype=jnp.float32):
    """state:[B,Ds] action:[B,Da]; params = (w1:[Ds+Da,H], b1:[1,H], w2:[H,H], b2:[1,H])."""
    w1, b1, w2, b2 = params
    B, Ds = state.shape
    Da = action.shape[1]
    H = w1.shape[1]

    # bf16 operands for the MXU; biases stay f32 (added after the dot).
    # TODO(synk): PyTorch does these matmuls in f32; bf16 operands are a small
    # numerics deviation (FLOPs are trivial, the kernel is HBM-writeback bound).
    s_bf = state.astype(jnp.bfloat16)
    a_bf = action.astype(jnp.bfloat16)
    w1s = w1[:Ds].astype(jnp.bfloat16)
    w1a = w1[Ds:].astype(jnp.bfloat16)
    w2_bf = w2.astype(jnp.bfloat16)
    b1_f = b1.astype(jnp.float32)
    b2_f = b2.astype(jnp.float32)

    TB, n_tiles = _select_batch_tiling(B, batch_tile)
    grid = (n_tiles,)

    def resident(shape):
        # Same block for every grid step -> stays in VMEM, DMA'd once.
        return pl.BlockSpec(shape, lambda i: (0, 0))

    rows = n_tiles * TB  # rows actually pushed through the MXU (incl. masked tail)
    flops = 2 * rows * H * (Ds + Da + H)
    transcendentals = rows * H
    bytes_accessed = (
        2 * (s_bf.size + a_bf.size + w1s.size + w1a.size + w2_bf.size)
        + 4 * (b1_f.size + b2_f.size)
        + jnp.dtype(out_dtype).itemsize * B * H
    )

    out = pl.pallas_call(
        q_critic_kernel,
        out_shape=jax.ShapeDtypeStruct((B, H), out_dtype),
        grid=grid,
        in_specs=[
            pl.BlockSpec((TB, Ds), lambda i: (i, 0)),   # state tile (pipelined; ragged tail padded)
            pl.BlockSpec((TB, Da), lambda i: (i, 0)),   # action tile (pipelined)
            resident((Ds, H)),                          # W1[:Ds]
            resident((Da, H)),                          # W1[Ds:]
            resident((1, H)),                           # b1
            resident((H, H)),                           # W2
            resident((1, H)),                           # b2
        ],
        out_specs=pl.BlockSpec((TB, H), lambda i: (i, 0)),  # lane-dense, tail store masked
        compiler_params=pltpu.CompilerParams(
            dimension_semantics=("parallel",),          # shard batch tiles across TCs (v7x)
        ),
        cost_estimate=pl.CostEstimate(
            flops=flops,
            transcendentals=transcendentals,
            bytes_accessed=bytes_accessed,
        ),
    )(s_bf, a_bf, w1s, w1a, b1_f, w2_bf, b2_f)
    return out


def q_critic_reference(state, action, params):
    """Same math in plain JAX (bf16 MXU operands, f32 accumulation)."""
    w1, b1, w2, b2 = params
    Ds = state.shape[1]
    s_bf = state.astype(jnp.bfloat16)
    a_bf = action.astype(jnp.bfloat16)
    h = (
        jnp.dot(s_bf, w1[:Ds].astype(jnp.bfloat16), preferred_element_type=jnp.float32)
        + jnp.dot(a_bf, w1[Ds:].astype(jnp.bfloat16), preferred_element_type=jnp.float32)
        + b1
    )
    h = jnp.tanh(h)
    return (
        jnp.dot(h.astype(jnp.bfloat16), w2.astype(jnp.bfloat16),
                preferred_element_type=jnp.float32)
        + b2
    )


def init_q_critic_params(key, input_size, hidden_size=128):
    """PyTorch nn.Linear-style init (uniform +-1/sqrt(fan_in)); weights stored
    transposed as [in_features, out_features]."""
    k1, k2, k3, k4 = jax.random.split(key, 4)
    bound1 = 1.0 / jnp.sqrt(input_size)
    bound2 = 1.0 / jnp.sqrt(hidden_size)
    w1 = jax.random.uniform(k1, (input_size, hidden_size), jnp.float32, -bound1, bound1)
    b1 = jax.random.uniform(k2, (1, hidden_size), jnp.float32, -bound1, bound1)
    w2 = jax.random.uniform(k3, (hidden_size, hidden_size), jnp.float32, -bound2, bound2)
    b2 = jax.random.uniform(k4, (1, hidden_size), jnp.float32, -bound2, bound2)
    return (w1, b1, w2, b2)


if __name__ == "__main__":
    key = jax.random.PRNGKey(0)
    k_state, k_action, k_params, k_state2, k_action2 = jax.random.split(key, 5)

    # Small shapes consistent with the module (hidden_size default = 128).
    batch, state_dim, action_dim, hidden = 4, 8, 4, 128
    state = jax.random.normal(k_state, (batch, state_dim), jnp.float32)
    action = jax.random.normal(k_action, (batch, action_dim), jnp.float32)
    params = init_q_critic_params(k_params, state_dim + action_dim, hidden)

    out = q_critic_forward(state, action, params)
    out = jax.block_until_ready(out)
    ref = q_critic_reference(state, action, params)
    assert out.shape == (batch, hidden)
    assert jnp.allclose(out, ref, atol=2e-2, rtol=2e-2)

    # Exercise the ragged / multi-tile path (B=40 -> TB=32, grid=2, masked tail).
    batch2 = 40
    state2 = jax.random.normal(k_state2, (batch2, state_dim), jnp.float32)
    action2 = jax.random.normal(k_action2, (batch2, action_dim), jnp.float32)
    out2 = jax.block_until_ready(q_critic_forward(state2, action2, params))
    ref2 = q_critic_reference(state2, action2, params)
    assert out2.shape == (batch2, hidden)
    assert jnp.allclose(out2, ref2, atol=2e-2, rtol=2e-2)

    print("KERNEL_OK")
</pallas_src>

<mosaic_0001>
module attributes {stable_mosaic.version = 11 : i64} {
  func.func @q_critic_kernel(%arg0: i32, %arg1: memref<16x8xbf16, #tpu.memory_space<vmem>>, %arg2: memref<16x4xbf16, #tpu.memory_space<vmem>>, %arg3: memref<8x128xbf16, #tpu.memory_space<vmem>>, %arg4: memref<4x128xbf16, #tpu.memory_space<vmem>>, %arg5: memref<1x128xf32, #tpu.memory_space<vmem>>, %arg6: memref<128x128xbf16, #tpu.memory_space<vmem>>, %arg7: memref<1x128xf32, #tpu.memory_space<vmem>>, %arg8: memref<16x128xf32, #tpu.memory_space<vmem>>) attributes {dimension_semantics = [#tpu.dimension_semantics<parallel>], iteration_bounds = array<i64: 1>, scalar_prefetch = 0 : i64, scratch_operands = 0 : i64, tpu.core_type = #tpu.core_type<tc>, window_params = [{transform_indices = @transform_0, window_bounds = array<i64: 16, 8>}, {transform_indices = @transform_1, window_bounds = array<i64: 16, 4>}, {pipeline_mode = #tpu.pipeline_mode<synchronous>, transform_indices = @transform_2, window_bounds = array<i64: 8, 128>}, {pipeline_mode = #tpu.pipeline_mode<synchronous>, transform_indices = @transform_3, window_bounds = array<i64: 4, 128>}, {pipeline_mode = #tpu.pipeline_mode<synchronous>, transform_indices = @transform_4, window_bounds = array<i64: 1, 128>}, {pipeline_mode = #tpu.pipeline_mode<synchronous>, transform_indices = @transform_5, window_bounds = array<i64: 128, 128>}, {pipeline_mode = #tpu.pipeline_mode<synchronous>, transform_indices = @transform_6, window_bounds = array<i64: 1, 128>}, {transform_indices = @transform_7, window_bounds = array<i64: 16, 128>}]} {
    %c0 = arith.constant 0 : index
    %c0_0 = arith.constant 0 : index
    %0 = vector.load %arg1[%c0, %c0_0] : memref<16x8xbf16, #tpu.memory_space<vmem>>, vector<16x8xbf16>
    %c0_1 = arith.constant 0 : index
    %c0_2 = arith.constant 0 : index
    %1 = vector.load %arg3[%c0_1, %c0_2] : memref<8x128xbf16, #tpu.memory_space<vmem>>, vector<8x128xbf16>
    %cst = arith.constant dense<0.000000e+00> : vector<16x128xf32>
    %2 = tpu.matmul %0, %1, %cst {dimension_numbers = #tpu.dot_dimension_numbers<[1], [0], [0], [1], [0, 0, 1, 1], [], []>} : vector<16x8xbf16>, vector<8x128xbf16>, vector<16x128xf32> -> vector<16x128xf32>
    %c0_3 = arith.constant 0 : index
    %c0_4 = arith.constant 0 : index
    %3 = vector.load %arg2[%c0_3, %c0_4] : memref<16x4xbf16, #tpu.memory_space<vmem>>, vector<16x4xbf16>
    %c0_5 = arith.constant 0 : index
    %c0_6 = arith.constant 0 : index
    %4 = vector.load %arg4[%c0_5, %c0_6] : memref<4x128xbf16, #tpu.memory_space<vmem>>, vector<4x128xbf16>
    %cst_7 = arith.constant dense<0.000000e+00> : vector<16x128xf32>
    %5 = tpu.matmul %3, %4, %cst_7 {dimension_numbers = #tpu.dot_dimension_numbers<[1], [0], [0], [1], [0, 0, 1, 1], [], []>} : vector<16x4xbf16>, vector<4x128xbf16>, vector<16x128xf32> -> vector<16x128xf32>
    %6 = arith.addf %2, %5 : vector<16x128xf32>
    %c0_8 = arith.constant 0 : index
    %c0_9 = arith.constant 0 : index
    %7 = vector.load %arg5[%c0_8, %c0_9] : memref<1x128xf32, #tpu.memory_space<vmem>>, vector<1x128xf32>
    %8 = vector.broadcast %7 : vector<1x128xf32> to vector<16x128xf32>
    %9 = arith.addf %6, %8 : vector<16x128xf32>
    %10 = math.tanh %9 : vector<16x128xf32>
    %11 = arith.truncf %10 : vector<16x128xf32> to vector<16x128xbf16>
    %c0_10 = arith.constant 0 : index
    %c0_11 = arith.constant 0 : index
    %12 = vector.load %arg6[%c0_10, %c0_11] : memref<128x128xbf16, #tpu.memory_space<vmem>>, vector<128x128xbf16>
    %cst_12 = arith.constant dense<0.000000e+00> : vector<16x128xf32>
    %13 = tpu.matmul %11, %12, %cst_12 {dimension_numbers = #tpu.dot_dimension_numbers<[1], [0], [0], [1], [0, 0, 1, 1], [], []>} : vector<16x128xbf16>, vector<128x128xbf16>, vector<16x128xf32> -> vector<16x128xf32>
    %c0_13 = arith.constant 0 : index
    %c0_14 = arith.constant 0 : index
    %14 = vector.load %arg7[%c0_13, %c0_14] : memref<1x128xf32, #tpu.memory_space<vmem>>, vector<1x128xf32>
    %15 = vector.broadcast %14 : vector<1x128xf32> to vector<16x128xf32>
    %16 = arith.addf %13, %15 : vector<16x128xf32>
    %c0_15 = arith.constant 0 : index
    %c0_16 = arith.constant 0 : index
    %17 = vector.load %arg8[%c0_15, %c0_16] : memref<16x128xf32, #tpu.memory_space<vmem>>, vector<16x128xf32>
    tpu.vector_store %arg8[%c0_15, %c0_16], %16 {strides = array<i32>} : memref<16x128xf32, #tpu.memory_space<vmem>>, vector<16x128xf32>,
    return
  }
  func.func @transform_0(%arg0: i32) -> (i32, i32) {
    %c0_i32 = arith.constant 0 : i32
    %c0_i32_0 = arith.constant 0 : i32
    return %arg0, %c0_i32 : i32, i32
  }
  func.func @transform_1(%arg0: i32) -> (i32, i32) {
    %c0_i32 = arith.constant 0 : i32
    %c0_i32_0 = arith.constant 0 : i32
    return %arg0, %c0_i32 : i32, i32
  }
  func.func @transform_2(%arg0: i32) -> (i32, i32) {
    %c0_i32 = arith.constant 0 : i32
    %c0_i32_0 = arith.constant 0 : i32
    %c0_i32_1 = arith.constant 0 : i32
    return %c0_i32, %c0_i32_0 : i32, i32
  }
  func.func @transform_3(%arg0: i32) -> (i32, i32) {
    %c0_i32 = arith.constant 0 : i32
    %c0_i32_0 = arith.constant 0 : i32
    %c0_i32_1 = arith.constant 0 : i32
    return %c0_i32, %c0_i32_0 : i32, i32
  }
  func.func @transform_4(%arg0: i32) -> (i32, i32) {
    %c0_i32 = arith.constant 0 : i32
    %c0_i32_0 = arith.constant 0 : i32
    %c0_i32_1 = arith.constant 0 : i32
    return %c0_i32, %c0_i32_0 : i32, i32
  }
  func.func @transform_5(%arg0: i32) -> (i32, i32) {
    %c0_i32 = arith.constant 0 : i32
    %c0_i32_0 = arith.constant 0 : i32
    %c0_i32_1 = arith.constant 0 : i32
    return %c0_i32, %c0_i32_0 : i32, i32
  }
  func.func @transform_6(%arg0: i32) -> (i32, i32) {
    %c0_i32 = arith.constant 0 : i32
    %c0_i32_0 = arith.constant 0 : i32
    %c0_i32_1 = arith.constant 0 : i32
    return %c0_i32, %c0_i32_0 : i32, i32
  }
  func.func @transform_7(%arg0: i32) -> (i32, i32) {
    %c0_i32 = arith.constant 0 : i32
    %c0_i32_0 = arith.constant 0 : i32
    return %arg0, %c0_i32 : i32, i32
  }
}

</mosaic_0001>

<llo_original>
// kernel: tpu_custom_call.1
$region0: #{tpu_custom_call.1}
  #allocation0 [shape = 'u32[]', space=smem, size = 0x4, offset = 0x4, fixed_abs, tag = 'smem constant byte address 0x4 - core index']
  #allocation1 [shape = 'u32[144,128]{1,0:T(1,128)}', space=vmem, size = 0x12000, scoped, tag = 'internal scratch']
  %s0 = inlined_call_operand.hbm [shape: bf16[4,8], index: 0, kind: input, shape index: {}]
  %s1 = inlined_call_operand.vmem [shape: bf16[4,4], index: 1, kind: input, shape index: {}]
  %s2 = inlined_call_operand.vmem [shape: bf16[8,128], index: 2, kind: input, shape index: {}]
  %s3 = inlined_call_operand.vmem [shape: bf16[4,128], index: 3, kind: input, shape index: {}]
  %s4 = inlined_call_operand.vmem [shape: f32[1,128], index: 4, kind: input, shape index: {}]
  %s5 = inlined_call_operand.hbm [shape: bf16[128,128], index: 5, kind: input, shape index: {}]
  %s6 = inlined_call_operand.vmem [shape: f32[1,128], index: 6, kind: input, shape index: {}]
  %s7 = inlined_call_operand.hbm [shape: f32[4,128], index: 7, kind: output, shape index: {}]
  %s8 = sld [smem:[#allocation0]]
  $region46: #{tpu_custom_call.1} parent=0
    _
  %s10 = ssub.s32 1, %s8
  %s11 = scalar_select 0, %s10, %s8
  $region1: #{tpu_custom_call.1} parent=0
    #allocation2 [shape = 'u8[4096]{0}', space=vmem, size = 0x1000, scoped, tag = 'input window, operand 0, single buffered']
    #allocation3 [shape = 's32[1]{0}', space=sflag, size = 0x4, scoped, tag = 'scoped memory for tpu_custom_call.1']
    #allocation4 [shape = 's32[1]{0}', space=sflag, size = 0x4, scoped, tag = 'scoped memory for tpu_custom_call.1']
    #allocation5 [shape = 'u8[32768]{0}', space=vmem, size = 0x8000, scoped, tag = 'input window, operand 5, single buffered']
    #allocation6 [shape = 's32[1]{0}', space=sflag, size = 0x4, scoped, tag = 'scoped memory for tpu_custom_call.1']
    #allocation7 [shape = 'u8[8192]{0}', space=vmem, size = 0x2000, scoped, tag = 'output window, operand 0, single buffered']
    %12 = vsyncpa [#allocation3], 0
    %13 = vsyncpa [#allocation6], 0
    %14 = vsyncpa [#allocation4], 0
    // Predicated region
    $region2: #{tpu_custom_call.1} parent=1 // pred_check
      _
    $region3: #{tpu_custom_call.1} parent=1 // pred_check_branch
      %16 = sbr.rel (0) target = $region5
    $region4: #{tpu_custom_call.1} parent=1 // pred_region
      %s18 = ssub.s32 128, 32
      %19 = vsyncadd [#allocation3], %s18
      %s20 = sshll.u32 [#allocation2], 4
      %s21 = int_to_ptr.vmem [resolvable:$true] %s20
      %26 = dma.hbm_to_vmem [thread:$0]  %s0, 32, %s21, [#allocation3], 32, 32, 2
    $region5: #{tpu_custom_call.1} parent=1 // pred_fallthru
      _
    // Predicated region
    $region6: #{tpu_custom_call.1} parent=1 // pred_check
      _
    $region7: #{tpu_custom_call.1} parent=1 // pred_check_branch
      %28 = sbr.rel (0) target = $region9
    $region8: #{tpu_custom_call.1} parent=1 // pred_region
      _
    $region9: #{tpu_custom_call.1} parent=1 // pred_fallthru
      _
    // Predicated region
    $region10: #{tpu_custom_call.1} parent=1 // pred_check
      _
    $region11: #{tpu_custom_call.1} parent=1 // pred_check_branch
      %30 = sbr.rel (0) target = $region13
    $region12: #{tpu_custom_call.1} parent=1 // pred_region
      _
    $region13: #{tpu_custom_call.1} parent=1 // pred_fallthru
      _
    // Predicated region
    $region14: #{tpu_custom_call.1} parent=1 // pred_check
      _
    $region15: #{tpu_custom_call.1} parent=1 // pred_check_branch
      %32 = sbr.rel (0) target = $region17
    $region16: #{tpu_custom_call.1} parent=1 // pred_region
      _
    $region17: #{tpu_custom_call.1} parent=1 // pred_fallthru
      _
    // Predicated region
    $region18: #{tpu_custom_call.1} parent=1 // pred_check
      _
    $region19: #{tpu_custom_call.1} parent=1 // pred_check_branch
      %34 = sbr.rel (0) target = $region21
    $region20: #{tpu_custom_call.1} parent=1 // pred_region
      _
    $region21: #{tpu_custom_call.1} parent=1 // pred_fallthru
      _
    // Predicated region
    $region22: #{tpu_custom_call.1} parent=1 // pred_check
      _
    $region23: #{tpu_custom_call.1} parent=1 // pred_check_branch
      %36 = sbr.rel (0) target = $region25
    $region24: #{tpu_custom_call.1} parent=1 // pred_region
      %s38 = ssub.s32 1024, 1024
      %39 = vsyncadd [#allocation6], %s38
      %s40 = sshll.u32 [#allocation5], 4
      %s41 = int_to_ptr.vmem [resolvable:$true] %s40
      %46 = dma.hbm_to_vmem [thread:$0]  %s5, 1024, %s41, [#allocation6], 64, 64, 4
    $region25: #{tpu_custom_call.1} parent=1 // pred_fallthru
      _
    // Predicated region
    $region26: #{tpu_custom_call.1} parent=1 // pred_check
      _
    $region27: #{tpu_custom_call.1} parent=1 // pred_check_branch
      %48 = sbr.rel (0) target = $region29
    $region28: #{tpu_custom_call.1} parent=1 // pred_region
      _
    $region29: #{tpu_custom_call.1} parent=1 // pred_fallthru
      _
    // Predicated region
    $region30: #{tpu_custom_call.1} parent=1 // pred_check
      _
    $region31: #{tpu_custom_call.1} parent=1 // pred_check_branch
      %50 = sbr.rel (0) target = $region33
    $region32: #{tpu_custom_call.1} parent=1 // pred_region
      %51 = dma.done [#allocation3], 128
    $region33: #{tpu_custom_call.1} parent=1 // pred_fallthru
      _
    // Predicated region
    $region34: #{tpu_custom_call.1} parent=1 // pred_check
      _
    $region35: #{tpu_custom_call.1} parent=1 // pred_check_branch
      %53 = sbr.rel (0) target = $region37
    $region36: #{tpu_custom_call.1} parent=1 // pred_region
      %54 = dma.done [#allocation6], 1024
    $region37: #{tpu_custom_call.1} parent=1 // pred_fallthru
      _
    %v56 = vld [vmem:[#allocation2] sm:$0x3]
    %v57 = vld [vmem:[#allocation2 + $0x2] sm:$0x3]
    %v58 = vld [vmem:[#allocation2 + $0x4] sm:$0x3]
    %v59 = vld [vmem:[#allocation2 + $0x6] sm:$0x3]
    %v60 = vld [vmem:[%s2] sm:$0xf]
    %v61 = vld [vmem:[%s1] sm:$0x3]
    %v62 = vld [vmem:[%s1 + $0x2] sm:$0x3]
    %v63 = vld [vmem:[%s1 + $0x4] sm:$0x3]
    %v64 = vld [vmem:[%s1 + $0x6] sm:$0x3]
    %v65 = vld [vmem:[%s3] sm:$0x3]
    %v70 = vcombine.low %v61, %v62
    %v71 = vcombine.low %v63, %v64
    %v73 = vunpack.c.l.s4 1983009808
    %v74 = vunpack.c.0.s8 %v73
    %v75 = vlaneseq
    %v76 = vshrl.u32 %v75, 7
    %v77 = vsub.s32 %v74, %v76
    %v78 = vrot.slane %v70, %v77
    %v80 = vunpack.c.l.s4 1983009808
    %v81 = vunpack.c.0.s8 %v80
    %v82 = vlaneseq
    %v83 = vshrl.u32 %v82, 7
    %v84 = vsub.s32 %v81, %v83
    %v85 = vrot.slane %v71, %v84
    %v86 = vcombine.low %v78, %v85
    %vm87 = vcmask 31744
    %v89 = vsel %vm87, %v86, 0
    %vm91 = vcmask 1041408
    %v93 = vsel %vm91, %v65, 0
    %95 = vmatprep.subr.bf16.mxu0 0
    %96 = vmatpush1.bf16.msra.mxu0 %v93
    %97 = vmatprep.subr.bf16.mxu0 0
    %98 = vmatpush1.bf16.msra.mxu0 0
    %99 = vmatprep.subr.bf16.mxu0 0
    %100 = vmatpush1.bf16.msra.mxu0 0
    %101 = vmatprep.subr.bf16.mxu0 0
    %102 = vmatpush1.bf16.msra.mxu0 0
    %103 = vmatprep.subr.bf16.mxu0 0
    %104 = vmatpush1.bf16.msra.mxu0 0
    %105 = vmatprep.subr.bf16.mxu0 0
    %106 = vmatpush1.bf16.msra.mxu0 0
    %107 = vmatprep.subr.bf16.mxu0 0
    %108 = vmatpush1.bf16.msra.mxu0 0
    %109 = vmatprep.subr.bf16.mxu0 0
    %110 = vmatpush1.bf16.msra.mxu0 0
    %111 = vmatprep.subr.bf16.mxu0 0
    %112 = vmatpush1.bf16.msra.mxu0 0
    %113 = vmatprep.subr.bf16.mxu0 0
    %114 = vmatpush1.bf16.msra.mxu0 0
    %115 = vmatprep.subr.bf16.mxu0 0
    %116 = vmatpush1.bf16.msra.mxu0 0
    %117 = vmatprep.subr.bf16.mxu0 0
    %118 = vmatpush1.bf16.msra.mxu0 0
    %119 = vmatprep.subr.bf16.mxu0 0
    %120 = vmatpush1.bf16.msra.mxu0 0
    %121 = vmatprep.subr.bf16.mxu0 0
    %122 = vmatpush1.bf16.msra.mxu0 0
    %123 = vmatprep.subr.bf16.mxu0 0
    %124 = vmatpush1.bf16.msra.mxu0 0
    %125 = vmatprep.subr.bf16.mxu0 0
    %126 = vmatpush1.bf16.msra.mxu0 0
    %127 = vmatprep.mubr.bf16.mxu0 0
    %128 = vmatmul.mubr.bf16.gmra.mrb[0].mxu0 %v89
    %v129 = vpop.f32.mrb[0].mxu0
    %v130 = vadd.f32 0.0, %v129
    %v131 = vpop.f32.mrb[0].mxu0
    %v132 = vpop.f32.mrb[0].mxu0
    %v133 = vadd.f32 0.0, %v132
    %v134 = vpop.f32.mrb[0].mxu0
    %135 = vdwg.mxu0
    %v140 = vcombine.low %v56, %v57
    %v141 = vcombine.low %v58, %v59
    %v143 = vunpack.c.l.s4 1983009808
    %v144 = vunpack.c.0.s8 %v143
    %v145 = vlaneseq
    %v146 = vshrl.u32 %v145, 7
    %v147 = vsub.s32 %v144, %v146
    %v148 = vrot.slane %v140, %v147
    %v150 = vunpack.c.l.s4 1983009808
    %v151 = vunpack.c.0.s8 %v150
    %v152 = vlaneseq
    %v153 = vshrl.u32 %v152, 7
    %v154 = vsub.s32 %v151, %v153
    %v155 = vrot.slane %v141, %v154
    %v156 = vcombine.low %v148, %v155
    %vm157 = vcmask 64512
    %v159 = vsel %vm157, %v156, 0
    %vm161 = vcmask 1043456
    %v163 = vsel %vm161, %v60, 0
    %165 = vmatprep.subr.bf16.mxu0 0
    %166 = vmatpush1.bf16.msra.mxu0 %v163
    %167 = vmatprep.subr.bf16.mxu0 0
    %168 = vmatpush1.bf16.msra.mxu0 0
    %169 = vmatprep.subr.bf16.mxu0 0
    %170 = vmatpush1.bf16.msra.mxu0 0
    %171 = vmatprep.subr.bf16.mxu0 0
    %172 = vmatpush1.bf16.msra.mxu0 0
    %173 = vmatprep.subr.bf16.mxu0 0
    %174 = vmatpush1.bf16.msra.mxu0 0
    %175 = vmatprep.subr.bf16.mxu0 0
    %176 = vmatpush1.bf16.msra.mxu0 0
    %177 = vmatprep.subr.bf16.mxu0 0
    %178 = vmatpush1.bf16.msra.mxu0 0
    %179 = vmatprep.subr.bf16.mxu0 0
    %180 = vmatpush1.bf16.msra.mxu0 0
    %181 = vmatprep.subr.bf16.mxu0 0
    %182 = vmatpush1.bf16.msra.mxu0 0
    %183 = vmatprep.subr.bf16.mxu0 0
    %184 = vmatpush1.bf16.msra.mxu0 0
    %185 = vmatprep.subr.bf16.mxu0 0
    %186 = vmatpush1.bf16.msra.mxu0 0
    %187 = vmatprep.subr.bf16.mxu0 0
    %188 = vmatpush1.bf16.msra.mxu0 0
    %189 = vmatprep.subr.bf16.mxu0 0
    %190 = vmatpush1.bf16.msra.mxu0 0
    %191 = vmatprep.subr.bf16.mxu0 0
    %192 = vmatpush1.bf16.msra.mxu0 0
    %193 = vmatprep.subr.bf16.mxu0 0
    %194 = vmatpush1.bf16.msra.mxu0 0
    %195 = vmatprep.subr.bf16.mxu0 0
    %196 = vmatpush1.bf16.msra.mxu0 0
    %197 = vmatprep.mubr.bf16.mxu0 0
    %198 = vmatmul.mubr.bf16.gmra.mrb[0].mxu0 %v159
    %v199 = vpop.f32.mrb[0].mxu0
    %v200 = vadd.f32 %v130, %v199
    %v201 = vpop.f32.mrb[0].mxu0
    %v202 = vpop.f32.mrb[0].mxu0
    %v203 = vadd.f32 %v133, %v202
    %v204 = vpop.f32.mrb[0].mxu0
    %205 = vdwg.mxu0
    %v206 = vld [vmem:[%s4] sm:$0x1]
    %v208 = vlaneseq
    %v209 = vshrl.u32 %v208, 7
    %v210 = vsub.s32 0, %v209
    %v211 = vrot.slane %v206, %v210
    %v213 = vadd.f32 %v200, %v211
    %v214 = vadd.f32 %v203, %v211
    %v215 = vtanh.pop %v213
    %v216 = vtanh.pop %v214
    %v217 = vpack.c.bf16 %v216, %v215
    %v218 = vld [vmem:[#allocation5] sm:$0xf]
    %v219 = vld [vmem:[#allocation5 + $0x4] sm:$0xf]
    %v220 = vld [vmem:[#allocation5 + $0x8] sm:$0xf]
    %v221 = vld [vmem:[#allocation5 + $0xc] sm:$0xf]
    %v222 = vld [vmem:[#allocation5 + $0x10] sm:$0xf]
    %v223 = vld [vmem:[#allocation5 + $0x14] sm:$0xf]
    %v224 = vld [vmem:[#allocation5 + $0x18] sm:$0xf]
    %v225 = vld [vmem:[#allocation5 + $0x1c] sm:$0xf]
    %v226 = vld [vmem:[#allocation5 + $0x20] sm:$0xf]
    %v227 = vld [vmem:[#allocation5 + $0x24] sm:$0xf]
    %v228 = vld [vmem:[#allocation5 + $0x28] sm:$0xf]
    %v229 = vld [vmem:[#allocation5 + $0x2c] sm:$0xf]
    %v230 = vld [vmem:[#allocation5 + $0x30] sm:$0xf]
    %v231 = vld [vmem:[#allocation5 + $0x34] sm:$0xf]
    %v232 = vld [vmem:[#allocation5 + $0x38] sm:$0xf]
    %v233 = vld [vmem:[#allocation5 + $0x3c] sm:$0xf]
    %v234 = vld [vmem:[%s6] sm:$0x1]
    %v236 = vlaneseq
    %v237 = vshrl.u32 %v236, 7
    %v238 = vsub.s32 0, %v237
    %v239 = vrot.slane %v234, %v238
    %v257 = vunpack.c.l.b16 %v218
    %v258 = vunpack.c.l.b16 %v219
    %v259 = vunpack.c.l.b16 %v220
    %v260 = vunpack.c.l.b16 %v221
    %v261 = vunpack.c.l.b16 %v222
    %v262 = vunpack.c.l.b16 %v223
    %v263 = vunpack.c.l.b16 %v224
    %v264 = vunpack.c.l.b16 %v225
    %v265 = vunpack.c.l.b16 %v226
    %v266 = vunpack.c.l.b16 %v227
    %v267 = vunpack.c.l.b16 %v228
    %v268 = vunpack.c.l.b16 %v229
    %v269 = vunpack.c.l.b16 %v230
    %v270 = vunpack.c.l.b16 %v231
    %v271 = vunpack.c.l.b16 %v232
    %v272 = vunpack.c.l.b16 %v233
    %v273 = vpack.c.b16 %v258, %v257
    %v274 = vpack.c.b16 %v260, %v259
    %v275 = vpack.c.b16 %v262, %v261
    %v276 = vpack.c.b16 %v264, %v263
    %v277 = vpack.c.b16 %v266, %v265
    %v278 = vpack.c.b16 %v268, %v267
    %v279 = vpack.c.b16 %v270, %v269
    %v280 = vpack.c.b16 %v272, %v271
    %289 = vmatprep.subr.bf16.mxu0 0
    %290 = vmatpush1.bf16.msra.mxu0 %v273
    %291 = vmatprep.subr.bf16.mxu0 0
    %292 = vmatpush1.bf16.msra.mxu0 %v274
    %293 = vmatprep.subr.bf16.mxu0 0
    %294 = vmatpush1.bf16.msra.mxu0 %v275
    %295 = vmatprep.subr.bf16.mxu0 0
    %296 = vmatpush1.bf16.msra.mxu0 %v276
    %297 = vmatprep.subr.bf16.mxu0 0
    %298 = vmatpush1.bf16.msra.mxu0 %v277
    %299 = vmatprep.subr.bf16.mxu0 0
    %300 = vmatpush1.bf16.msra.mxu0 %v278
    %301 = vmatprep.subr.bf16.mxu0 0
    %302 = vmatpush1.bf16.msra.mxu0 %v279
    %303 = vmatprep.subr.bf16.mxu0 0
    %304 = vmatpush1.bf16.msra.mxu0 %v280
    %305 = vmatprep.subr.bf16.mxu0 0
    %306 = vmatpush1.bf16.msra.mxu0 0
    %307 = vmatprep.subr.bf16.mxu0 0
    %308 = vmatpush1.bf16.msra.mxu0 0
    %309 = vmatprep.subr.bf16.mxu0 0
    %310 = vmatpush1.bf16.msra.mxu0 0
    %311 = vmatprep.subr.bf16.mxu0 0
    %312 = vmatpush1.bf16.msra.mxu0 0
    %313 = vmatprep.subr.bf16.mxu0 0
    %314 = vmatpush1.bf16.msra.mxu0 0
    %315 = vmatprep.subr.bf16.mxu0 0
    %316 = vmatpush1.bf16.msra.mxu0 0
    %317 = vmatprep.subr.bf16.mxu0 0
    %318 = vmatpush1.bf16.msra.mxu0 0
    %319 = vmatprep.subr.bf16.mxu0 0
    %320 = vmatpush1.bf16.msra.mxu0 0
    %321 = vmatprep.mubr.bf16.mxu0 0
    %322 = vmatmul.mubr.bf16.gmra.mrb[0].mxu0 %v217
    %v323 = vpop.f32.mrb[0].mxu0
    %v324 = vadd.f32 %v239, %v323
    %v325 = vpop.f32.mrb[0].mxu0
    %v326 = vpop.f32.mrb[0].mxu0
    %v327 = vadd.f32 %v239, %v326
    %v328 = vpop.f32.mrb[0].mxu0
    %329 = vdwg.mxu0
    %330 = vst [vmem:[#allocation7] sm:$0xff] %v324
    %331 = vst [vmem:[#allocation7 + $0x8] sm:$0xff] %v327
    // Predicated region
    $region38: #{tpu_custom_call.1} parent=1 // pred_check
      _
    $region39: #{tpu_custom_call.1} parent=1 // pred_check_branch
      %333 = sbr.rel (0) target = $region41
    $region40: #{tpu_custom_call.1} parent=1 // pred_region
      %s335 = ssub.s32 256, 64
      %336 = vsyncadd [#allocation4], %s335
      %s337 = sshll.u32 [#allocation7], 4
      %s338 = int_to_ptr.vmem [resolvable:$true] %s337
      %343 = dma.vmem_to_hbm [thread:$0]  %s338, 64, %s7, [#allocation4], 64, 64, 4
    $region41: #{tpu_custom_call.1} parent=1 // pred_fallthru
      _
    // Predicated region
    $region42: #{tpu_custom_call.1} parent=1 // pred_check
      _
    $region43: #{tpu_custom_call.1} parent=1 // pred_check_branch
      %345 = sbr.rel (0) target = $region45
    $region44: #{tpu_custom_call.1} parent=1 // pred_region
      %346 = dma.done [#allocation4], 256
    $region45: #{tpu_custom_call.1} parent=1 // pred_fallthru
      _
    %347 = vsyncpa [#allocation3], 1
    %348 = vsyncpa [#allocation6], 1
    %349 = vsyncpa [#allocation4], 1

</llo_original>
